<compile_context>
chip_gen: v5e
topology: v5e:2x2
jax: 0.10.0
libtpu: 0.0.40
codegen_flags: <defaults>
</compile_context>

<pallas_src>
import functools
import math

import jax
import jax.numpy as jnp
from jax import lax
from jax.experimental import pallas as pl
from jax.experimental.pallas import tpu as pltpu


def _multibox_loss_kernel(nvalid_ref, prior_ref, loc_ref, conf_ref,
                          tgt_rows_ref, tgt_cols_ref, out_ref, *,
                          threshold, negpos_ratio, inv_var0, inv_var1,
                          idx_search_iters):
    P = prior_ref.shape[1]
    C = conf_ref.shape[1]
    O = tgt_cols_ref.shape[1]

    b = pl.program_id(0)
    n_valid = nvalid_ref[b]                         # number of real GT boxes in this image

    # ---------------- priors: precomputed lane-dense slab (8, P) ----------------
    pri = prior_ref[...]                            # rows: x1,y1,x2,y2,cx,cy,1/w,1/h
    px1, py1 = pri[0:1], pri[1:2]
    px2, py2 = pri[2:3], pri[3:4]
    p_cen = pri[4:6]                                # (2,P)
    inv_p_wh = pri[6:8]                             # (2,P)
    area_p = (px2 - px1) * (py2 - py1)              # (1,P)

    # ---------------- ground truth for this image ----------------
    t_cols = tgt_cols_ref[0].astype(jnp.float32)    # (O,5): x1,y1,x2,y2,label columns
    tx1, ty1 = t_cols[:, 0:1], t_cols[:, 1:2]
    tx2, ty2 = t_cols[:, 2:3], t_cols[:, 3:4]
    area_t = (tx2 - tx1) * (ty2 - ty1)              # (O,1)
    t_rows = tgt_rows_ref[0].astype(jnp.float32)    # (5,O) for the MXU gather

    o_col = lax.broadcasted_iota(jnp.int32, (O, 1), 0)
    valid_col = o_col < n_valid                     # (O,1): padded GT rows masked out
    o_iota = lax.broadcasted_iota(jnp.int32, (O, P), 0)
    p_iota = lax.broadcasted_iota(jnp.int32, (O, P), 1)
    lane_p = lax.broadcasted_iota(jnp.int32, (1, P), 1)
    c_iota = lax.broadcasted_iota(jnp.int32, (C, P), 0)

    # ---------------- jaccard overlap (O,P) + matching ----------------
    iw = jnp.maximum(jnp.minimum(px2, tx2) - jnp.maximum(px1, tx1), 0.0)
    ih = jnp.maximum(jnp.minimum(py2, ty2) - jnp.maximum(py1, ty1), 0.0)
    inter = iw * ih
    union = area_p + area_t - inter
    ov = inter / union                              # exact divide: match fidelity near threshold
    ov = jnp.where(valid_col, ov, -1.0)             # padded truths can never match

    # best truth per prior (first index on ties) / best prior per truth
    bto = jnp.max(ov, axis=0, keepdims=True)                                    # (1,P)
    bti = jnp.min(jnp.where(ov == bto, o_iota, O), axis=0, keepdims=True)       # (1,P)
    bpo = jnp.max(ov, axis=1, keepdims=True)                                    # (O,1)
    bpi = jnp.min(jnp.where(ov == bpo, p_iota, P), axis=1, keepdims=True)       # (O,1)

    # force each valid truth's best prior to match that truth (index_fill_ + loop in PyTorch;
    # last truth wins on conflict, matching the sequential loop)
    match_mat = jnp.logical_and(p_iota == bpi, valid_col)                       # (O,P)
    forced_idx = jnp.max(jnp.where(match_mat, o_iota, -1), axis=0, keepdims=True)   # (1,P)
    any_match = forced_idx >= 0
    bto = jnp.where(any_match, 2.0, bto)
    bti = jnp.where(any_match, forced_idx, bti)

    # gather matched GT (x1,y1,x2,y2,label) with ONE MXU matmul: (5,O)@(O,P) -> (5,P)
    onehot = (o_iota == bti).astype(jnp.float32)                                # (O,P)
    matched = jnp.dot(t_rows, onehot, preferred_element_type=jnp.float32)       # (5,P)
    m_lo, m_hi, mlab = matched[0:2], matched[2:4], matched[4:5]

    conf_t = jnp.where(bto < threshold, 0, (mlab + 1.0).astype(jnp.int32))      # (1,P)
    pos = conf_t > 0                                                            # (1,P)
    num_pos_i = jnp.sum(pos.astype(jnp.int32))                                  # scalar

    # ---------------- localization loss (smooth L1 over positives) ----------------
    loc_b = loc_ref[0].astype(jnp.float32)                                      # (4,P)
    g_cen = ((m_lo + m_hi) * 0.5 - p_cen) * inv_p_wh * inv_var0                 # (2,P)
    g_wh = jnp.log((m_hi - m_lo) * inv_p_wh) * inv_var1                         # (2,P)

    def smooth_l1(d):
        a = jnp.abs(d)
        return jnp.where(a < 1.0, 0.5 * d * d, a - 0.5)

    l_per = jnp.sum(smooth_l1(loc_b[0:2] - g_cen) + smooth_l1(loc_b[2:4] - g_wh),
                    axis=0, keepdims=True)                                      # (1,P)
    loss_l = jnp.sum(jnp.where(pos, l_per, 0.0))                                # scalar

    # ---------------- confidence loss with hard-negative mining ----------------
    conf_b = conf_ref[0].astype(jnp.float32)                                    # (C,P)
    rowmax = jnp.max(conf_b, axis=0, keepdims=True)                             # (1,P)
    lse = jnp.log(jnp.sum(jnp.exp(conf_b - rowmax), axis=0, keepdims=True)) + rowmax
    gathered = jnp.sum(jnp.where(c_iota == conf_t, conf_b, 0.0),
                       axis=0, keepdims=True)                                   # (1,P)
    ce = lse - gathered                 # single LSE reused for mining score AND cross-entropy
    lc = jnp.where(pos, 0.0, ce)        # mining score, positives zeroed (loss_c[pos] = 0)

    num_neg = jnp.minimum(negpos_ratio * num_pos_i, P - 1)                      # scalar int32

    # Exact top-k selection (replaces the O(P^2) pairwise rank):
    # radix-select the num_neg-th largest mining score.  lc >= 0, so its IEEE754 bit pattern
    # viewed as int32 is order-isomorphic to its value; greedy MSB-first construction finds the
    # largest v with count(lc_bits >= v) >= num_neg, i.e. exactly the k-th largest value.
    lc_bits = pltpu.bitcast(jnp.maximum(lc, 0.0), jnp.int32)                    # (1,P)

    def vsel(_, carry):
        prefix, bit = carry
        cand = prefix | bit
        cnt = jnp.sum((lc_bits >= cand).astype(jnp.int32))
        return jnp.where(cnt >= num_neg, cand, prefix), bit >> 1

    thr_bits, _ = lax.fori_loop(0, 31, vsel, (jnp.int32(0), jnp.int32(1 << 30)))

    gt_mask = lc_bits > thr_bits                                                # strictly above
    eq_mask = lc_bits == thr_bits                                               # tied at threshold
    c_gt = jnp.sum(gt_mask.astype(jnp.int32))
    remaining = num_neg - c_gt          # how many tied scores to take, by smallest index

    def isel(_, carry):                 # binary search: smallest cut with count(eq & idx<cut)>=rem
        lo, hi = carry
        mid = (lo + hi) >> 1
        cnt = jnp.sum(jnp.logical_and(eq_mask, lane_p < mid).astype(jnp.int32))
        take = cnt >= remaining
        return jnp.where(take, lo, mid + 1), jnp.where(take, mid, hi)

    cut, _ = lax.fori_loop(0, idx_search_iters, isel, (jnp.int32(0), jnp.int32(P)))

    neg = jnp.logical_or(gt_mask, jnp.logical_and(eq_mask, lane_p < cut))
    sel = jnp.logical_or(pos, neg)
    loss_c = jnp.sum(jnp.where(sel, ce, 0.0))                                   # scalar

    # ---------------- pack per-image partials into a lane-dense output slab ----------------
    lane128 = lax.broadcasted_iota(jnp.int32, (1, 128), 1)
    packed = (jnp.where(lane128 == 0, loss_l, 0.0)
              + jnp.where(lane128 == 1, loss_c, 0.0)
              + jnp.where(lane128 == 2, num_pos_i.astype(jnp.float32), 0.0))    # (1,128)
    out_ref[0] = jnp.broadcast_to(packed, (8, 128))


@functools.partial(jax.jit, static_argnames=("num_classes", "threshold",
                                              "negpos_ratio", "variance"))
def multibox_loss(loc_data, conf_data, priors, targets, num_objs=None, *, num_classes,
                  threshold=0.5, negpos_ratio=3, variance=(0.1, 0.2)):
    """Returns (loss_l, loss_c) exactly like MultiBoxLoss.forward.

    num_objs: optional (B,) int array with the number of valid GT rows per image (rows beyond
    it in `targets` are treated as padding).  Defaults to all rows valid.
    """
    B, P, _ = loc_data.shape
    assert conf_data.shape == (B, P, num_classes)
    assert targets.ndim == 3 and targets.shape[0] == B and targets.shape[2] == 5
    O = targets.shape[1]
    C = num_classes

    # Lane-dense layouts: P goes on the lane axis everywhere.
    pri = priors[:P, :].astype(jnp.float32)
    cx, cy, w, h = pri[:, 0], pri[:, 1], pri[:, 2], pri[:, 3]
    prior_slab = jnp.stack([cx - 0.5 * w, cy - 0.5 * h, cx + 0.5 * w, cy + 0.5 * h,
                            cx, cy, 1.0 / w, 1.0 / h], axis=0)          # (8,P)
    loc_T = jnp.transpose(loc_data, (0, 2, 1))                          # (B,4,P)
    conf_T = jnp.transpose(conf_data, (0, 2, 1))                        # (B,C,P)
    tgt_cols = targets.astype(jnp.float32)                              # (B,O,5)
    tgt_rows = jnp.transpose(tgt_cols, (0, 2, 1))                       # (B,5,O)
    if num_objs is None:
        num_objs = jnp.full((B,), O, jnp.int32)
    else:
        num_objs = num_objs.astype(jnp.int32)

    kernel = functools.partial(
        _multibox_loss_kernel,
        threshold=float(threshold),
        negpos_ratio=int(negpos_ratio),
        inv_var0=float(1.0 / variance[0]),
        inv_var1=float(1.0 / variance[1]),
        idx_search_iters=int(math.ceil(math.log2(P + 1))) + 2,
    )

    cost = pl.CostEstimate(
        flops=int(B * (14 * P * O + 10 * P * C + 50 * P + 2 * 5 * O * P + 70 * P)),
        transcendentals=int(B * (P * C + 3 * P)),
        bytes_accessed=int(loc_data.size * loc_data.dtype.itemsize
                           + conf_data.size * conf_data.dtype.itemsize
                           + B * (8 * P + 2 * O * 5 + 8 * 128) * 4),
    )

    partials = pl.pallas_call(
        kernel,
        out_shape=jax.ShapeDtypeStruct((B, 8, 128), jnp.float32),
        grid_spec=pltpu.PrefetchScalarGridSpec(
            num_scalar_prefetch=1,                                      # num_objs -> SMEM
            grid=(B,),
            in_specs=[
                pl.BlockSpec((8, P), lambda b, nv: (0, 0)),             # prior slab, resident
                pl.BlockSpec((1, 4, P), lambda b, nv: (b, 0, 0)),       # loc, one image per step
                pl.BlockSpec((1, C, P), lambda b, nv: (b, 0, 0)),       # conf, one image per step
                pl.BlockSpec((1, 5, O), lambda b, nv: (b, 0, 0)),       # GT rows (5,O)
                pl.BlockSpec((1, O, 5), lambda b, nv: (b, 0, 0)),       # GT cols (O,5)
            ],
            out_specs=pl.BlockSpec((1, 8, 128), lambda b, nv: (b, 0, 0)),
        ),
        compiler_params=pltpu.CompilerParams(
            dimension_semantics=("parallel",),    # independent images -> v7x megacore split
        ),
        cost_estimate=cost,
    )(num_objs, prior_slab, loc_T, conf_T, tgt_rows, tgt_cols)

    loss_l = jnp.sum(partials[:, 0, 0])
    loss_c = jnp.sum(partials[:, 0, 1])
    n = jnp.sum(partials[:, 0, 2])
    # TODO(synk): PyTorch raises BaseException when N == 0; cannot raise on-device, so the
    #             division reproduces the degenerate case as inf/nan instead.
    return loss_l / n, loss_c / n


if __name__ == "__main__":
    key = jax.random.PRNGKey(0)
    B, P, C, O = 2, 128, 8, 4   # batch, num_priors, num_classes, num_objs

    k1, k2, k3, k4, k5, k6 = jax.random.split(key, 6)

    # "SSD net" outputs (deterministic synthetic)
    loc_data = 0.1 * jax.random.normal(k1, (B, P, 4), jnp.float32)
    conf_data = jax.random.normal(k2, (B, P, C), jnp.float32)

    # prior boxes in center-size form
    prior_centers = jax.random.uniform(k3, (P, 2), jnp.float32, 0.2, 0.8)
    prior_sizes = jax.random.uniform(k4, (P, 2), jnp.float32, 0.1, 0.4)
    priors = jnp.concatenate([prior_centers, prior_sizes], axis=1)

    # ground truth: corner-form boxes + label, shape (B, O, 5)
    gt_centers = jax.random.uniform(k5, (B, O, 2), jnp.float32, 0.3, 0.7)
    gt_half = jax.random.uniform(k6, (B, O, 2), jnp.float32, 0.05, 0.2)
    gt_boxes = jnp.concatenate([gt_centers - gt_half, gt_centers + gt_half], axis=-1)
    gt_labels = jax.random.randint(jax.random.PRNGKey(42), (B, O, 1), 0, C - 1).astype(jnp.float32)
    targets = jnp.concatenate([gt_boxes, gt_labels], axis=-1)

    loss_l, loss_c = multibox_loss(
        loc_data, conf_data, priors, targets,
        num_classes=C, threshold=0.5, negpos_ratio=3, variance=(0.1, 0.2))

    jax.block_until_ready((loss_l, loss_c))
    print("KERNEL_OK")
</pallas_src>

<mosaic_0001>
module attributes {stable_mosaic.version = 11 : i64} {
  func.func @_multibox_loss_kernel(%arg0: i32, %arg1: memref<2xi32, #tpu.memory_space<smem>>, %arg2: memref<8x128xf32, #tpu.memory_space<vmem>>, %arg3: memref<1x4x128xf32, #tpu.memory_space<vmem>>, %arg4: memref<1x8x128xf32, #tpu.memory_space<vmem>>, %arg5: memref<1x5x4xf32, #tpu.memory_space<vmem>>, %arg6: memref<1x4x5xf32, #tpu.memory_space<vmem>>, %arg7: memref<1x8x128xf32, #tpu.memory_space<vmem>>) attributes {dimension_semantics = [#tpu.dimension_semantics<parallel>], iteration_bounds = array<i64: 2>, scalar_prefetch = 1 : i64, scratch_operands = 0 : i64, tpu.core_type = #tpu.core_type<tc>, window_params = [{pipeline_mode = #tpu.pipeline_mode<synchronous>, transform_indices = @transform_0, window_bounds = array<i64: 8, 128>}, {transform_indices = @transform_1, window_bounds = array<i64: 1, 4, 128>}, {transform_indices = @transform_2, window_bounds = array<i64: 1, 8, 128>}, {transform_indices = @transform_3, window_bounds = array<i64: 1, 5, 4>}, {transform_indices = @transform_4, window_bounds = array<i64: 1, 4, 5>}, {transform_indices = @transform_5, window_bounds = array<i64: 1, 8, 128>}]} {
    %0 = arith.index_cast %arg0 : i32 to index
    %1 = memref.load %arg1[%0] : memref<2xi32, #tpu.memory_space<smem>>
    %c0 = arith.constant 0 : index
    %c0_0 = arith.constant 0 : index
    %2 = vector.load %arg2[%c0, %c0_0] : memref<8x128xf32, #tpu.memory_space<vmem>>, vector<8x128xf32>
    %3 = vector.extract_strided_slice %2 {offsets = [0, 0], sizes = [1, 128], strides = [1, 1]} : vector<8x128xf32> to vector<1x128xf32>
    %4 = vector.extract_strided_slice %2 {offsets = [1, 0], sizes = [1, 128], strides = [1, 1]} : vector<8x128xf32> to vector<1x128xf32>
    %5 = vector.extract_strided_slice %2 {offsets = [2, 0], sizes = [1, 128], strides = [1, 1]} : vector<8x128xf32> to vector<1x128xf32>
    %6 = vector.extract_strided_slice %2 {offsets = [3, 0], sizes = [1, 128], strides = [1, 1]} : vector<8x128xf32> to vector<1x128xf32>
    %7 = vector.extract_strided_slice %2 {offsets = [4, 0], sizes = [2, 128], strides = [1, 1]} : vector<8x128xf32> to vector<2x128xf32>
    %8 = vector.extract_strided_slice %2 {offsets = [6, 0], sizes = [2, 128], strides = [1, 1]} : vector<8x128xf32> to vector<2x128xf32>
    %9 = arith.subf %5, %3 : vector<1x128xf32>
    %10 = arith.subf %6, %4 : vector<1x128xf32>
    %11 = arith.mulf %9, %10 : vector<1x128xf32>
    %c0_1 = arith.constant 0 : index
    %c0_2 = arith.constant 0 : index
    %c0_3 = arith.constant 0 : index
    %12 = vector.load %arg6[%c0_1, %c0_2, %c0_3] : memref<1x4x5xf32, #tpu.memory_space<vmem>>, vector<1x4x5xf32>
    %13 = vector.shape_cast %12 : vector<1x4x5xf32> to vector<4x5xf32>
    %14 = vector.extract_strided_slice %13 {offsets = [0, 0], sizes = [4, 1], strides = [1, 1]} : vector<4x5xf32> to vector<4x1xf32>
    %15 = vector.extract_strided_slice %13 {offsets = [0, 1], sizes = [4, 1], strides = [1, 1]} : vector<4x5xf32> to vector<4x1xf32>
    %16 = vector.extract_strided_slice %13 {offsets = [0, 2], sizes = [4, 1], strides = [1, 1]} : vector<4x5xf32> to vector<4x1xf32>
    %17 = vector.extract_strided_slice %13 {offsets = [0, 3], sizes = [4, 1], strides = [1, 1]} : vector<4x5xf32> to vector<4x1xf32>
    %18 = arith.subf %16, %14 : vector<4x1xf32>
    %19 = arith.subf %17, %15 : vector<4x1xf32>
    %20 = arith.mulf %18, %19 : vector<4x1xf32>
    %c0_4 = arith.constant 0 : index
    %c0_5 = arith.constant 0 : index
    %c0_6 = arith.constant 0 : index
    %21 = vector.load %arg5[%c0_4, %c0_5, %c0_6] : memref<1x5x4xf32, #tpu.memory_space<vmem>>, vector<1x5x4xf32>
    %22 = vector.shape_cast %21 : vector<1x5x4xf32> to vector<5x4xf32>
    %23 = tpu.iota {dimensions = array<i32: 0>} : vector<4x1xi32>
    %24 = vector.broadcast %1 : i32 to vector<4x1xi32>
    %25 = arith.cmpi slt, %23, %24 : vector<4x1xi32>
    %26 = tpu.iota {dimensions = array<i32: 0>} : vector<4x128xi32>
    %27 = tpu.iota {dimensions = array<i32: 1>} : vector<4x128xi32>
    %28 = tpu.iota {dimensions = array<i32: 1>} : vector<1x128xi32>
    %29 = tpu.iota {dimensions = array<i32: 0>} : vector<8x128xi32>
    %30 = vector.broadcast %5 : vector<1x128xf32> to vector<4x128xf32>
    %31 = vector.broadcast %16 : vector<4x1xf32> to vector<4x128xf32>
    %32 = arith.minimumf %30, %31 : vector<4x128xf32>
    %33 = vector.broadcast %3 : vector<1x128xf32> to vector<4x128xf32>
    %34 = vector.broadcast %14 : vector<4x1xf32> to vector<4x128xf32>
    %35 = arith.maximumf %33, %34 : vector<4x128xf32>
    %36 = arith.subf %32, %35 : vector<4x128xf32>
    %cst = arith.constant 0.000000e+00 : f32
    %37 = vector.broadcast %cst : f32 to vector<4x128xf32>
    %38 = arith.maximumf %36, %37 : vector<4x128xf32>
    %39 = vector.broadcast %6 : vector<1x128xf32> to vector<4x128xf32>
    %40 = vector.broadcast %17 : vector<4x1xf32> to vector<4x128xf32>
    %41 = arith.minimumf %39, %40 : vector<4x128xf32>
    %42 = vector.broadcast %4 : vector<1x128xf32> to vector<4x128xf32>
    %43 = vector.broadcast %15 : vector<4x1xf32> to vector<4x128xf32>
    %44 = arith.maximumf %42, %43 : vector<4x128xf32>
    %45 = arith.subf %41, %44 : vector<4x128xf32>
    %cst_7 = arith.constant 0.000000e+00 : f32
    %46 = vector.broadcast %cst_7 : f32 to vector<4x128xf32>
    %47 = arith.maximumf %45, %46 : vector<4x128xf32>
    %48 = arith.mulf %38, %47 : vector<4x128xf32>
    %49 = vector.broadcast %11 : vector<1x128xf32> to vector<4x128xf32>
    %50 = vector.broadcast %20 : vector<4x1xf32> to vector<4x128xf32>
    %51 = arith.addf %49, %50 : vector<4x128xf32>
    %52 = arith.subf %51, %48 : vector<4x128xf32>
    %53 = arith.divf %48, %52 : vector<4x128xf32>
    %cst_8 = arith.constant -1.000000e+00 : f32
    %54 = vector.shape_cast %25 : vector<4x1xi1> to vector<4x1xi1>
    %55 = vector.broadcast %54 : vector<4x1xi1> to vector<4x128xi1>
    %56 = vector.broadcast %cst_8 : f32 to vector<4x128xf32>
    %57 = arith.select %55, %53, %56 : vector<4x128xi1>, vector<4x128xf32>
    %cst_9 = arith.constant dense<0xFF800000> : vector<128xf32>
    %58 = vector.multi_reduction <maximumf>, %57, %cst_9 [0] : vector<4x128xf32> to vector<128xf32>
    %59 = vector.shape_cast %58 : vector<128xf32> to vector<1x128xf32>
    %60 = vector.broadcast %59 : vector<1x128xf32> to vector<4x128xf32>
    %61 = arith.cmpf oeq, %57, %60 : vector<4x128xf32>
    %c4_i32 = arith.constant 4 : i32
    %62 = vector.broadcast %c4_i32 : i32 to vector<4x128xi32>
    %63 = arith.select %61, %26, %62 : vector<4x128xi1>, vector<4x128xi32>
    %cst_10 = arith.constant dense<2147483647> : vector<128xi32>
    %64 = vector.multi_reduction <minsi>, %63, %cst_10 [0] : vector<4x128xi32> to vector<128xi32>
    %65 = vector.shape_cast %64 : vector<128xi32> to vector<1x128xi32>
    %cst_11 = arith.constant dense<0xFF800000> : vector<4xf32>
    %66 = vector.multi_reduction <maximumf>, %57, %cst_11 [1] : vector<4x128xf32> to vector<4xf32>
    %67 = vector.shape_cast %66 : vector<4xf32> to vector<4x1xf32>
    %68 = vector.broadcast %67 : vector<4x1xf32> to vector<4x128xf32>
    %69 = arith.cmpf oeq, %57, %68 : vector<4x128xf32>
    %c128_i32 = arith.constant 128 : i32
    %70 = vector.broadcast %c128_i32 : i32 to vector<4x128xi32>
    %71 = arith.select %69, %27, %70 : vector<4x128xi1>, vector<4x128xi32>
    %cst_12 = arith.constant dense<2147483647> : vector<4xi32>
    %72 = vector.multi_reduction <minsi>, %71, %cst_12 [1] : vector<4x128xi32> to vector<4xi32>
    %73 = vector.shape_cast %72 : vector<4xi32> to vector<4x1xi32>
    %74 = vector.broadcast %73 : vector<4x1xi32> to vector<4x128xi32>
    %75 = arith.cmpi eq, %27, %74 : vector<4x128xi32>
    %76 = vector.broadcast %25 : vector<4x1xi1> to vector<4x128xi1>
    %77 = arith.andi %75, %76 : vector<4x128xi1>
    %c-1_i32 = arith.constant -1 : i32
    %78 = vector.broadcast %c-1_i32 : i32 to vector<4x128xi32>
    %79 = arith.select %77, %26, %78 : vector<4x128xi1>, vector<4x128xi32>
    %cst_13 = arith.constant dense<-2147483648> : vector<128xi32>
    %80 = vector.multi_reduction <maxsi>, %79, %cst_13 [0] : vector<4x128xi32> to vector<128xi32>
    %81 = vector.shape_cast %80 : vector<128xi32> to vector<1x128xi32>
    %c0_i32 = arith.constant 0 : i32
    %82 = vector.broadcast %c0_i32 : i32 to vector<1x128xi32>
    %83 = arith.cmpi sge, %81, %82 : vector<1x128xi32>
    %cst_14 = arith.constant 2.000000e+00 : f32
    %84 = vector.broadcast %cst_14 : f32 to vector<1x128xf32>
    %85 = arith.select %83, %84, %59 : vector<1x128xi1>, vector<1x128xf32>
    %86 = arith.select %83, %81, %65 : vector<1x128xi1>, vector<1x128xi32>
    %87 = vector.broadcast %86 : vector<1x128xi32> to vector<4x128xi32>
    %88 = arith.cmpi eq, %26, %87 : vector<4x128xi32>
    %89 = arith.extui %88 : vector<4x128xi1> to vector<4x128xi32>
    %90 = arith.sitofp %89 : vector<4x128xi32> to vector<4x128xf32>
    %cst_15 = arith.constant dense<0.000000e+00> : vector<5x128xf32>
    %91 = tpu.matmul %22, %90, %cst_15 {dimension_numbers = #tpu.dot_dimension_numbers<[1], [0], [0], [1], [0, 0, 1, 1], [], []>} : vector<5x4xf32>, vector<4x128xf32>, vector<5x128xf32> -> vector<5x128xf32>
    %92 = vector.extract_strided_slice %91 {offsets = [0, 0], sizes = [2, 128], strides = [1, 1]} : vector<5x128xf32> to vector<2x128xf32>
    %93 = vector.extract_strided_slice %91 {offsets = [2, 0], sizes = [2, 128], strides = [1, 1]} : vector<5x128xf32> to vector<2x128xf32>
    %94 = vector.extract_strided_slice %91 {offsets = [4, 0], sizes = [1, 128], strides = [1, 1]} : vector<5x128xf32> to vector<1x128xf32>
    %cst_16 = arith.constant 5.000000e-01 : f32
    %95 = vector.broadcast %cst_16 : f32 to vector<1x128xf32>
    %96 = arith.cmpf olt, %85, %95 : vector<1x128xf32>
    %cst_17 = arith.constant 1.000000e+00 : f32
    %97 = vector.broadcast %cst_17 : f32 to vector<1x128xf32>
    %98 = arith.addf %94, %97 : vector<1x128xf32>
    %99 = arith.fptosi %98 : vector<1x128xf32> to vector<1x128xi32>
    %c0_i32_18 = arith.constant 0 : i32
    %100 = vector.broadcast %c0_i32_18 : i32 to vector<1x128xi32>
    %101 = arith.select %96, %100, %99 : vector<1x128xi1>, vector<1x128xi32>
    %c0_i32_19 = arith.constant 0 : i32
    %102 = vector.broadcast %c0_i32_19 : i32 to vector<1x128xi32>
    %103 = arith.cmpi sgt, %101, %102 : vector<1x128xi32>
    %104 = arith.extui %103 : vector<1x128xi1> to vector<1x128xi32>
    %105 = vector.shape_cast %104 : vector<1x128xi32> to vector<1x1x128xi32>
    %cst_20 = arith.constant dense<0> : vector<1xi32>
    %106 = vector.multi_reduction <add>, %105, %cst_20 [1, 2] : vector<1x1x128xi32> to vector<1xi32>
    %107 = vector.shape_cast %106 : vector<1xi32> to vector<1x1x1xi32>
    %108 = vector.extract %107[0, 0, 0] : i32 from vector<1x1x1xi32>
    %c0_21 = arith.constant 0 : index
    %c0_22 = arith.constant 0 : index
    %c0_23 = arith.constant 0 : index
    %109 = vector.load %arg3[%c0_21, %c0_22, %c0_23] : memref<1x4x128xf32, #tpu.memory_space<vmem>>, vector<1x4x128xf32>
    %110 = vector.shape_cast %109 : vector<1x4x128xf32> to vector<4x128xf32>
    %111 = arith.addf %92, %93 : vector<2x128xf32>
    %cst_24 = arith.constant 5.000000e-01 : f32
    %112 = vector.broadcast %cst_24 : f32 to vector<2x128xf32>
    %113 = arith.mulf %111, %112 : vector<2x128xf32>
    %114 = arith.subf %113, %7 : vector<2x128xf32>
    %115 = arith.mulf %114, %8 : vector<2x128xf32>
    %cst_25 = arith.constant 1.000000e+01 : f32
    %116 = vector.broadcast %cst_25 : f32 to vector<2x128xf32>
    %117 = arith.mulf %115, %116 : vector<2x128xf32>
    %118 = arith.subf %93, %92 : vector<2x128xf32>
    %119 = arith.mulf %118, %8 : vector<2x128xf32>
    %120 = math.log %119 : vector<2x128xf32>
    %cst_26 = arith.constant 5.000000e+00 : f32
    %121 = vector.broadcast %cst_26 : f32 to vector<2x128xf32>
    %122 = arith.mulf %120, %121 : vector<2x128xf32>
    %123 = vector.extract_strided_slice %110 {offsets = [0, 0], sizes = [2, 128], strides = [1, 1]} : vector<4x128xf32> to vector<2x128xf32>
    %124 = arith.subf %123, %117 : vector<2x128xf32>
    %125 = math.absf %124 : vector<2x128xf32>
    %cst_27 = arith.constant 1.000000e+00 : f32
    %126 = vector.broadcast %cst_27 : f32 to vector<2x128xf32>
    %127 = arith.cmpf olt, %125, %126 : vector<2x128xf32>
    %cst_28 = arith.constant 5.000000e-01 : f32
    %128 = vector.broadcast %cst_28 : f32 to vector<2x128xf32>
    %129 = arith.mulf %128, %124 : vector<2x128xf32>
    %130 = arith.mulf %129, %124 : vector<2x128xf32>
    %cst_29 = arith.constant 5.000000e-01 : f32
    %131 = vector.broadcast %cst_29 : f32 to vector<2x128xf32>
    %132 = arith.subf %125, %131 : vector<2x128xf32>
    %133 = arith.select %127, %130, %132 : vector<2x128xi1>, vector<2x128xf32>
    %134 = vector.extract_strided_slice %110 {offsets = [2, 0], sizes = [2, 128], strides = [1, 1]} : vector<4x128xf32> to vector<2x128xf32>
    %135 = arith.subf %134, %122 : vector<2x128xf32>
    %136 = math.absf %135 : vector<2x128xf32>
    %cst_30 = arith.constant 1.000000e+00 : f32
    %137 = vector.broadcast %cst_30 : f32 to vector<2x128xf32>
    %138 = arith.cmpf olt, %136, %137 : vector<2x128xf32>
    %cst_31 = arith.constant 5.000000e-01 : f32
    %139 = vector.broadcast %cst_31 : f32 to vector<2x128xf32>
    %140 = arith.mulf %139, %135 : vector<2x128xf32>
    %141 = arith.mulf %140, %135 : vector<2x128xf32>
    %cst_32 = arith.constant 5.000000e-01 : f32
    %142 = vector.broadcast %cst_32 : f32 to vector<2x128xf32>
    %143 = arith.subf %136, %142 : vector<2x128xf32>
    %144 = arith.select %138, %141, %143 : vector<2x128xi1>, vector<2x128xf32>
    %145 = arith.addf %133, %144 : vector<2x128xf32>
    %cst_33 = arith.constant dense<0.000000e+00> : vector<128xf32>
    %146 = vector.multi_reduction <add>, %145, %cst_33 [0] : vector<2x128xf32> to vector<128xf32>
    %147 = vector.shape_cast %146 : vector<128xf32> to vector<1x128xf32>
    %cst_34 = arith.constant 0.000000e+00 : f32
    %148 = vector.broadcast %cst_34 : f32 to vector<1x128xf32>
    %149 = arith.select %103, %147, %148 : vector<1x128xi1>, vector<1x128xf32>
    %150 = vector.shape_cast %149 : vector<1x128xf32> to vector<1x1x128xf32>
    %cst_35 = arith.constant dense<0.000000e+00> : vector<1xf32>
    %151 = vector.multi_reduction <add>, %150, %cst_35 [1, 2] : vector<1x1x128xf32> to vector<1xf32>
    %152 = vector.shape_cast %151 : vector<1xf32> to vector<1x1x1xf32>
    %153 = vector.extract %152[0, 0, 0] : f32 from vector<1x1x1xf32>
    %c0_36 = arith.constant 0 : index
    %c0_37 = arith.constant 0 : index
    %c0_38 = arith.constant 0 : index
    %154 = vector.load %arg4[%c0_36, %c0_37, %c0_38] : memref<1x8x128xf32, #tpu.memory_space<vmem>>, vector<1x8x128xf32>
    %155 = vector.shape_cast %154 : vector<1x8x128xf32> to vector<8x128xf32>
    %cst_39 = arith.constant dense<0xFF800000> : vector<128xf32>
    %156 = vector.multi_reduction <maximumf>, %155, %cst_39 [0] : vector<8x128xf32> to vector<128xf32>
    %157 = vector.shape_cast %156 : vector<128xf32> to vector<1x128xf32>
    %158 = vector.broadcast %157 : vector<1x128xf32> to vector<8x128xf32>
    %159 = arith.subf %155, %158 : vector<8x128xf32>
    %160 = math.exp %159 : vector<8x128xf32>
    %cst_40 = arith.constant dense<0.000000e+00> : vector<128xf32>
    %161 = vector.multi_reduction <add>, %160, %cst_40 [0] : vector<8x128xf32> to vector<128xf32>
    %162 = vector.shape_cast %161 : vector<128xf32> to vector<1x128xf32>
    %163 = math.log %162 : vector<1x128xf32>
    %164 = arith.addf %163, %157 : vector<1x128xf32>
    %165 = vector.broadcast %101 : vector<1x128xi32> to vector<8x128xi32>
    %166 = arith.cmpi eq, %29, %165 : vector<8x128xi32>
    %cst_41 = arith.constant 0.000000e+00 : f32
    %167 = vector.broadcast %cst_41 : f32 to vector<8x128xf32>
    %168 = arith.select %166, %155, %167 : vector<8x128xi1>, vector<8x128xf32>
    %cst_42 = arith.constant dense<0.000000e+00> : vector<128xf32>
    %169 = vector.multi_reduction <add>, %168, %cst_42 [0] : vector<8x128xf32> to vector<128xf32>
    %170 = vector.shape_cast %169 : vector<128xf32> to vector<1x128xf32>
    %171 = arith.subf %164, %170 : vector<1x128xf32>
    %cst_43 = arith.constant 0.000000e+00 : f32
    %172 = vector.broadcast %cst_43 : f32 to vector<1x128xf32>
    %173 = arith.select %103, %172, %171 : vector<1x128xi1>, vector<1x128xf32>
    %c3_i32 = arith.constant 3 : i32
    %174 = arith.muli %c3_i32, %108 : i32
    %c127_i32 = arith.constant 127 : i32
    %175 = arith.minsi %174, %c127_i32 : i32
    %cst_44 = arith.constant 0.000000e+00 : f32
    %176 = vector.broadcast %cst_44 : f32 to vector<1x128xf32>
    %177 = arith.maximumf %173, %176 : vector<1x128xf32>
    %178 = tpu.bitcast %177 : vector<1x128xf32> -> vector<1x128xi32>
    %c0_i32_45 = arith.constant 0 : i32
    %c1073741824_i32 = arith.constant 1073741824 : i32
    %c0_i32_46 = arith.constant 0 : i32
    %c31_i32 = arith.constant 31 : i32
    %179 = arith.addi %c0_i32_46, %c31_i32 : i32
    %c1_i32 = arith.constant 1 : i32
    %180:2 = scf.for %arg8 = %c0_i32_46 to %179 step %c1_i32 iter_args(%arg9 = %c0_i32_45, %arg10 = %c1073741824_i32) -> (i32, i32)  : i32 {
      %228 = arith.ori %arg9, %arg10 : i32
      %229 = vector.broadcast %228 : i32 to vector<1x128xi32>
      %230 = arith.cmpi sge, %178, %229 : vector<1x128xi32>
      %231 = arith.extui %230 : vector<1x128xi1> to vector<1x128xi32>
      %232 = vector.shape_cast %231 : vector<1x128xi32> to vector<1x1x128xi32>
      %cst_62 = arith.constant dense<0> : vector<1xi32>
      %233 = vector.multi_reduction <add>, %232, %cst_62 [1, 2] : vector<1x1x128xi32> to vector<1xi32>
      %234 = vector.shape_cast %233 : vector<1xi32> to vector<1x1x1xi32>
      %235 = vector.extract %234[0, 0, 0] : i32 from vector<1x1x1xi32>
      %236 = arith.cmpi sge, %235, %175 : i32
      %237 = arith.select %236, %228, %arg9 : i32
      %c1_i32_63 = arith.constant 1 : i32
      %238 = arith.shrsi %arg10, %c1_i32_63 : i32
      scf.yield %237, %238 : i32, i32
    }
    %181 = vector.broadcast %180#0 : i32 to vector<1x128xi32>
    %182 = arith.cmpi sgt, %178, %181 : vector<1x128xi32>
    %183 = vector.broadcast %180#0 : i32 to vector<1x128xi32>
    %184 = arith.cmpi eq, %178, %183 : vector<1x128xi32>
    %185 = arith.extui %182 : vector<1x128xi1> to vector<1x128xi32>
    %186 = vector.shape_cast %185 : vector<1x128xi32> to vector<1x1x128xi32>
    %cst_47 = arith.constant dense<0> : vector<1xi32>
    %187 = vector.multi_reduction <add>, %186, %cst_47 [1, 2] : vector<1x1x128xi32> to vector<1xi32>
    %188 = vector.shape_cast %187 : vector<1xi32> to vector<1x1x1xi32>
    %189 = vector.extract %188[0, 0, 0] : i32 from vector<1x1x1xi32>
    %190 = arith.subi %175, %189 : i32
    %c0_i32_48 = arith.constant 0 : i32
    %c128_i32_49 = arith.constant 128 : i32
    %c0_i32_50 = arith.constant 0 : i32
    %c10_i32 = arith.constant 10 : i32
    %191 = arith.addi %c0_i32_50, %c10_i32 : i32
    %c1_i32_51 = arith.constant 1 : i32
    %192:2 = scf.for %arg8 = %c0_i32_50 to %191 step %c1_i32_51 iter_args(%arg9 = %c0_i32_48, %arg10 = %c128_i32_49) -> (i32, i32)  : i32 {
      %228 = arith.addi %arg9, %arg10 : i32
      %c1_i32_62 = arith.constant 1 : i32
      %229 = arith.shrsi %228, %c1_i32_62 : i32
      %230 = vector.broadcast %229 : i32 to vector<1x128xi32>
      %231 = arith.cmpi slt, %28, %230 : vector<1x128xi32>
      %232 = arith.andi %184, %231 : vector<1x128xi1>
      %233 = arith.extui %232 : vector<1x128xi1> to vector<1x128xi32>
      %234 = vector.shape_cast %233 : vector<1x128xi32> to vector<1x1x128xi32>
      %cst_63 = arith.constant dense<0> : vector<1xi32>
      %235 = vector.multi_reduction <add>, %234, %cst_63 [1, 2] : vector<1x1x128xi32> to vector<1xi32>
      %236 = vector.shape_cast %235 : vector<1xi32> to vector<1x1x1xi32>
      %237 = vector.extract %236[0, 0, 0] : i32 from vector<1x1x1xi32>
      %238 = arith.cmpi sge, %237, %190 : i32
      %c1_i32_64 = arith.constant 1 : i32
      %239 = arith.addi %229, %c1_i32_64 : i32
      %240 = arith.select %238, %arg9, %239 : i32
      %241 = arith.select %238, %229, %arg10 : i32
      scf.yield %240, %241 : i32, i32
    }
    %193 = vector.broadcast %192#0 : i32 to vector<1x128xi32>
    %194 = arith.cmpi slt, %28, %193 : vector<1x128xi32>
    %195 = arith.andi %184, %194 : vector<1x128xi1>
    %196 = arith.ori %182, %195 : vector<1x128xi1>
    %197 = arith.ori %103, %196 : vector<1x128xi1>
    %cst_52 = arith.constant 0.000000e+00 : f32
    %198 = vector.broadcast %cst_52 : f32 to vector<1x128xf32>
    %199 = arith.select %197, %171, %198 : vector<1x128xi1>, vector<1x128xf32>
    %200 = vector.shape_cast %199 : vector<1x128xf32> to vector<1x1x128xf32>
    %cst_53 = arith.constant dense<0.000000e+00> : vector<1xf32>
    %201 = vector.multi_reduction <add>, %200, %cst_53 [1, 2] : vector<1x1x128xf32> to vector<1xf32>
    %202 = vector.shape_cast %201 : vector<1xf32> to vector<1x1x1xf32>
    %203 = vector.extract %202[0, 0, 0] : f32 from vector<1x1x1xf32>
    %204 = tpu.iota {dimensions = array<i32: 1>} : vector<1x128xi32>
    %c0_i32_54 = arith.constant 0 : i32
    %205 = vector.broadcast %c0_i32_54 : i32 to vector<1x128xi32>
    %206 = arith.cmpi eq, %204, %205 : vector<1x128xi32>
    %cst_55 = arith.constant 0.000000e+00 : f32
    %207 = vector.broadcast %153 : f32 to vector<1x128xf32>
    %208 = vector.broadcast %cst_55 : f32 to vector<1x128xf32>
    %209 = arith.select %206, %207, %208 : vector<1x128xi1>, vector<1x128xf32>
    %c1_i32_56 = arith.constant 1 : i32
    %210 = vector.broadcast %c1_i32_56 : i32 to vector<1x128xi32>
    %211 = arith.cmpi eq, %204, %210 : vector<1x128xi32>
    %cst_57 = arith.constant 0.000000e+00 : f32
    %212 = vector.broadcast %203 : f32 to vector<1x128xf32>
    %213 = vector.broadcast %cst_57 : f32 to vector<1x128xf32>
    %214 = arith.select %211, %212, %213 : vector<1x128xi1>, vector<1x128xf32>
    %215 = arith.addf %209, %214 : vector<1x128xf32>
    %c2_i32 = arith.constant 2 : i32
    %216 = vector.broadcast %c2_i32 : i32 to vector<1x128xi32>
    %217 = arith.cmpi eq, %204, %216 : vector<1x128xi32>
    %218 = arith.sitofp %108 : i32 to f32
    %cst_58 = arith.constant 0.000000e+00 : f32
    %219 = vector.broadcast %218 : f32 to vector<1x128xf32>
    %220 = vector.broadcast %cst_58 : f32 to vector<1x128xf32>
    %221 = arith.select %217, %219, %220 : vector<1x128xi1>, vector<1x128xf32>
    %222 = arith.addf %215, %221 : vector<1x128xf32>
    %223 = vector.shape_cast %222 : vector<1x128xf32> to vector<1x128xf32>
    %224 = vector.broadcast %223 : vector<1x128xf32> to vector<8x128xf32>
    %c0_59 = arith.constant 0 : index
    %c0_60 = arith.constant 0 : index
    %c0_61 = arith.constant 0 : index
    %225 = vector.load %arg7[%c0_59, %c0_60, %c0_61] : memref<1x8x128xf32, #tpu.memory_space<vmem>>, vector<1x8x128xf32>
    %226 = vector.shape_cast %225 : vector<1x8x128xf32> to vector<8x128xf32>
    %227 = vector.shape_cast %224 : vector<8x128xf32> to vector<1x8x128xf32>
    tpu.vector_store %arg7[%c0_59, %c0_60, %c0_61], %227 {strides = array<i32>} : memref<1x8x128xf32, #tpu.memory_space<vmem>>, vector<1x8x128xf32>,
    return
  }
  func.func @transform_0(%arg0: i32, %arg1: memref<2xi32, #tpu.memory_space<smem>>) -> (i32, i32) {
    %c0_i32 = arith.constant 0 : i32
    %c0_i32_0 = arith.constant 0 : i32
    %c0_i32_1 = arith.constant 0 : i32
    return %c0_i32, %c0_i32_0 : i32, i32
  }
  func.func @transform_1(%arg0: i32, %arg1: memref<2xi32, #tpu.memory_space<smem>>) -> (i32, i32, i32) {
    %c0_i32 = arith.constant 0 : i32
    %c0_i32_0 = arith.constant 0 : i32
    %c0_i32_1 = arith.constant 0 : i32
    return %arg0, %c0_i32, %c0_i32_0 : i32, i32, i32
  }
  func.func @transform_2(%arg0: i32, %arg1: memref<2xi32, #tpu.memory_space<smem>>) -> (i32, i32, i32) {
    %c0_i32 = arith.constant 0 : i32
    %c0_i32_0 = arith.constant 0 : i32
    %c0_i32_1 = arith.constant 0 : i32
    return %arg0, %c0_i32, %c0_i32_0 : i32, i32, i32
  }
  func.func @transform_3(%arg0: i32, %arg1: memref<2xi32, #tpu.memory_space<smem>>) -> (i32, i32, i32) {
    %c0_i32 = arith.constant 0 : i32
    %c0_i32_0 = arith.constant 0 : i32
    %c0_i32_1 = arith.constant 0 : i32
    return %arg0, %c0_i32, %c0_i32_0 : i32, i32, i32
  }
  func.func @transform_4(%arg0: i32, %arg1: memref<2xi32, #tpu.memory_space<smem>>) -> (i32, i32, i32) {
    %c0_i32 = arith.constant 0 : i32
    %c0_i32_0 = arith.constant 0 : i32
    %c0_i32_1 = arith.constant 0 : i32
    return %arg0, %c0_i32, %c0_i32_0 : i32, i32, i32
  }
  func.func @transform_5(%arg0: i32, %arg1: memref<2xi32, #tpu.memory_space<smem>>) -> (i32, i32, i32) {
    %c0_i32 = arith.constant 0 : i32
    %c0_i32_0 = arith.constant 0 : i32
    %c0_i32_1 = arith.constant 0 : i32
    return %arg0, %c0_i32, %c0_i32_0 : i32, i32, i32
  }
}

</mosaic_0001>

<llo_original>
// kernel: multibox_loss.1
$region0: #{multibox_loss.1}
  #allocation0 [shape = 'u32[]', space=smem, size = 0x4, offset = 0x4, fixed_abs, tag = 'smem constant byte address 0x4 - core index']
  #allocation1 [shape = 'u32[72,128]{1,0:T(1,128)}', space=vmem, size = 0x9000, scoped, tag = 'internal scratch']
  #allocation2 [shape = 's32[1]{0}', space=sflag, size = 0x4, scoped, tag = 'scoped memory for multibox_loss.1']
  #allocation3 [shape = 'u8[512]{0}', space=smem, size = 0x200, scoped, tag = 'prefetched SMEM operand 0']
  %s0 = inlined_call_operand.vmem [shape: s32[2], index: 0, kind: input, shape index: {}]
  %s1 = inlined_call_operand.vmem [shape: f32[8,128], index: 1, kind: input, shape index: {}]
  %s2 = inlined_call_operand.vmem [shape: f32[2,4,128], index: 2, kind: input, shape index: {}]
  %s3 = inlined_call_operand.vmem [shape: f32[2,8,128], index: 3, kind: input, shape index: {}]
  %s4 = inlined_call_operand.vmem [shape: f32[2,5,4], index: 4, kind: input, shape index: {}]
  %s5 = inlined_call_operand.vmem [shape: f32[2,4,5], index: 5, kind: input, shape index: {}]
  %s6 = inlined_call_operand.vmem [shape: f32[2,8,128], index: 6, kind: output, shape index: {}]
  %s7 = sld [smem:[#allocation0]]
  $region67: #{multibox_loss.1} parent=0
    _
  %s9 = ssub.s32 1, %s7
  %s10 = scalar_select 0, %s9, %s7
  %s12 = sshll.u32 %s0, 4
  %s13 = int_to_ptr.vmem [resolvable:$true] %s12
  %15 = dma.vmem_to_smem %s13, 16, [#allocation3], [#allocation2]
  %17 = dma.done [#allocation2], 16
  %18 = sfence
  loop: start=0, step=1, limit=4
  $region2: #{multibox_loss.1} parent=0 // loop_pre_header
    _
  $region3: #{multibox_loss.1} parent=0 // loop_header
    %s20 = sphi 0, %s24
    %p21 = scmp.ge.s32.totalorder %s20, 4
    %s28 = sphi 0, %s28
    %s30 = sphi 0, %s28
    %s31 = sphi 0, %s30
    %s45 = sphi 0, %s31
    %s51 = sphi 0, %s53
    %s54 = sphi 0, %s51
    %s55 = sphi 0, %s54
    %s71 = sphi 0, %s55
    %s77 = sphi 0, %s79
    %s80 = sphi 0, %s77
    %s81 = sphi 0, %s80
    %s97 = sphi 0, %s81
    %s103 = sphi 0, %s105
    %s106 = sphi 0, %s103
    %s107 = sphi 0, %s106
    %s123 = sphi 0, %s107
    %s129 = sphi 0, %s131
    %s132 = sphi 0, %s129
    %s133 = sphi 0, %s132
    %s149 = sphi 0, %s133
    %s155 = sphi 0, %s157
    %s158 = sphi 0, %s155
    %s159 = sphi 0, %s158
    %s175 = sphi 0, %s159
  $region4: #{multibox_loss.1} parent=0 // loop_header_branch
    %23 = sbr.rel (%p21) target = $region8
  $region5: #{multibox_loss.1} parent=0 // loop_body
    %s25 = ssub.s32 %s20, 1
    %s26 = ssub.s32 %s20, 2
    %s27 = sadd.s32 %s20, 1
    %s29 = sadd.s32 %s28, 1
    %p32 = scmp.eq.s32.totalorder %s20, 1
    %p33 = scmp.ne.s32.totalorder %s28, %s30
    %p34 = scmp.eq.s32.totalorder %s20, 0
    %p35 = por %p33, %p34
    %p36 = scmp.ne.s32.totalorder %s28, %s30
    %p37 = scmp.eq.s32.totalorder %s25, 1
    %p38 = por %p36, %p37
    %p39 = scmp.ne.s32.totalorder %s30, %s31
    %p40 = scmp.eq.s32.totalorder %s25, 0
    %p41 = por %p39, %p40
    %p42 = scmp.ne.s32.totalorder %s30, %s31
    %p43 = scmp.eq.s32.totalorder %s26, 1
    %p44 = por %p42, %p43
    %p46 = scmp.ne.s32.totalorder %s31, %s45
    %p47 = scmp.eq.s32.totalorder %s26, 0
    %p48 = por %p46, %p47
    %s49 = ssub.s32 %s20, %s27
    %p50 = scmp.eq.s32.totalorder %s49, 0
    %s52 = sadd.s32 %s51, 1
    %s53 = scalar_select %p50, %s51, %s52
    %p56 = pneg %p50
    %p57 = scmp.eq.s32.totalorder %s20, 1
    %p58 = por %p56, %p57
    %p59 = scmp.ne.s32.totalorder %s51, %s54
    %p60 = scmp.eq.s32.totalorder %s20, 0
    %p61 = por %p59, %p60
    %p62 = scmp.ne.s32.totalorder %s51, %s54
    %p63 = scmp.eq.s32.totalorder %s25, 1
    %p64 = por %p62, %p63
    %p65 = scmp.ne.s32.totalorder %s54, %s55
    %p66 = scmp.eq.s32.totalorder %s25, 0
    %p67 = por %p65, %p66
    %p68 = scmp.ne.s32.totalorder %s54, %s55
    %p69 = scmp.eq.s32.totalorder %s26, 1
    %p70 = por %p68, %p69
    %p72 = scmp.ne.s32.totalorder %s55, %s71
    %p73 = scmp.eq.s32.totalorder %s26, 0
    %p74 = por %p72, %p73
    %s75 = ssub.s32 %s20, %s27
    %p76 = scmp.eq.s32.totalorder %s75, 0
    %s78 = sadd.s32 %s77, 1
    %s79 = scalar_select %p76, %s77, %s78
    %p82 = pneg %p76
    %p83 = scmp.eq.s32.totalorder %s20, 1
    %p84 = por %p82, %p83
    %p85 = scmp.ne.s32.totalorder %s77, %s80
    %p86 = scmp.eq.s32.totalorder %s20, 0
    %p87 = por %p85, %p86
    %p88 = scmp.ne.s32.totalorder %s77, %s80
    %p89 = scmp.eq.s32.totalorder %s25, 1
    %p90 = por %p88, %p89
    %p91 = scmp.ne.s32.totalorder %s80, %s81
    %p92 = scmp.eq.s32.totalorder %s25, 0
    %p93 = por %p91, %p92
    %p94 = scmp.ne.s32.totalorder %s80, %s81
    %p95 = scmp.eq.s32.totalorder %s26, 1
    %p96 = por %p94, %p95
    %p98 = scmp.ne.s32.totalorder %s81, %s97
    %p99 = scmp.eq.s32.totalorder %s26, 0
    %p100 = por %p98, %p99
    %s101 = ssub.s32 %s20, %s27
    %p102 = scmp.eq.s32.totalorder %s101, 0
    %s104 = sadd.s32 %s103, 1
    %s105 = scalar_select %p102, %s103, %s104
    %p108 = pneg %p102
    %p109 = scmp.eq.s32.totalorder %s20, 1
    %p110 = por %p108, %p109
    %p111 = scmp.ne.s32.totalorder %s103, %s106
    %p112 = scmp.eq.s32.totalorder %s20, 0
    %p113 = por %p111, %p112
    %p114 = scmp.ne.s32.totalorder %s103, %s106
    %p115 = scmp.eq.s32.totalorder %s25, 1
    %p116 = por %p114, %p115
    %p117 = scmp.ne.s32.totalorder %s106, %s107
    %p118 = scmp.eq.s32.totalorder %s25, 0
    %p119 = por %p117, %p118
    %p120 = scmp.ne.s32.totalorder %s106, %s107
    %p121 = scmp.eq.s32.totalorder %s26, 1
    %p122 = por %p120, %p121
    %p124 = scmp.ne.s32.totalorder %s107, %s123
    %p125 = scmp.eq.s32.totalorder %s26, 0
    %p126 = por %p124, %p125
    %s127 = ssub.s32 %s20, %s27
    %p128 = scmp.eq.s32.totalorder %s127, 0
    %s130 = sadd.s32 %s129, 1
    %s131 = scalar_select %p128, %s129, %s130
    %p134 = pneg %p128
    %p135 = scmp.eq.s32.totalorder %s20, 1
    %p136 = por %p134, %p135
    %p137 = scmp.ne.s32.totalorder %s129, %s132
    %p138 = scmp.eq.s32.totalorder %s20, 0
    %p139 = por %p137, %p138
    %p140 = scmp.ne.s32.totalorder %s129, %s132
    %p141 = scmp.eq.s32.totalorder %s25, 1
    %p142 = por %p140, %p141
    %p143 = scmp.ne.s32.totalorder %s132, %s133
    %p144 = scmp.eq.s32.totalorder %s25, 0
    %p145 = por %p143, %p144
    %p146 = scmp.ne.s32.totalorder %s132, %s133
    %p147 = scmp.eq.s32.totalorder %s26, 1
    %p148 = por %p146, %p147
    %p150 = scmp.ne.s32.totalorder %s133, %s149
    %p151 = scmp.eq.s32.totalorder %s26, 0
    %p152 = por %p150, %p151
    %s153 = ssub.s32 %s20, %s27
    %p154 = scmp.eq.s32.totalorder %s153, 0
    %s156 = sadd.s32 %s155, 1
    %s157 = scalar_select %p154, %s155, %s156
    %p160 = pneg %p154
    %p161 = scmp.eq.s32.totalorder %s20, 1
    %p162 = por %p160, %p161
    %p163 = scmp.ne.s32.totalorder %s155, %s158
    %p164 = scmp.eq.s32.totalorder %s20, 0
    %p165 = por %p163, %p164
    %p166 = scmp.ne.s32.totalorder %s155, %s158
    %p167 = scmp.eq.s32.totalorder %s25, 1
    %p168 = por %p166, %p167
    %p169 = scmp.ne.s32.totalorder %s158, %s159
    %p170 = scmp.eq.s32.totalorder %s25, 0
    %p171 = por %p169, %p170
    %p172 = scmp.ne.s32.totalorder %s158, %s159
    %p173 = scmp.eq.s32.totalorder %s26, 1
    %p174 = por %p172, %p173
    %p176 = scmp.ne.s32.totalorder %s159, %s175
    %p177 = scmp.eq.s32.totalorder %s26, 0
    %p178 = por %p176, %p177
    %p179 = scmp.le.s32.totalorder 1, %s20
    %p180 = scmp.lt.s32.totalorder %s20, 3
    %p181 = pnand %p179, %p180
    %p182 = pneg %p181
    // Predicated region
    $region9: #{multibox_loss.1} parent=5 // pred_check
      _
    $region10: #{multibox_loss.1} parent=5 // pred_check_branch
      %184 = sbr.rel (%p181) target = $region12
    $region11: #{multibox_loss.1} parent=5 // pred_region
      %s185 = ssub.s32 %s20, 1
      // Predicated region
      $region13: #{multibox_loss.1} parent=11 // pred_check
        %p186 = pneg %p41
      $region14: #{multibox_loss.1} parent=11 // pred_check_branch
        %188 = sbr.rel (%p186) target = $region16
      $region15: #{multibox_loss.1} parent=11 // pred_region
        _
      $region16: #{multibox_loss.1} parent=11 // pred_fallthru
        _
    $region12: #{multibox_loss.1} parent=5 // pred_fallthru
      _
    %p189 = scmp.lt.s32.totalorder %s20, 2
    // Predicated region
    $region17: #{multibox_loss.1} parent=5 // pred_check
      %p190 = pneg %p189
    $region18: #{multibox_loss.1} parent=5 // pred_check_branch
      %192 = sbr.rel (%p190) target = $region20
    $region19: #{multibox_loss.1} parent=5 // pred_region
      // Predicated region
      $region21: #{multibox_loss.1} parent=19 // pred_check
        %p193 = pneg %p61
      $region22: #{multibox_loss.1} parent=19 // pred_check_branch
        %195 = sbr.rel (%p193) target = $region24
      $region23: #{multibox_loss.1} parent=19 // pred_region
        %p196 = scmp.lt.s32.totalorder %s20, 1
        %s197 = scalar_select %p196, %s20, 1
        %s198 = smul.addr %s197, 4
        %s199 = scalar_lea.vmem %s2, %s198
      $region24: #{multibox_loss.1} parent=19 // pred_fallthru
        _
      // Predicated region
      $region25: #{multibox_loss.1} parent=19 // pred_check
        %p200 = pneg %p87
      $region26: #{multibox_loss.1} parent=19 // pred_check_branch
        %202 = sbr.rel (%p200) target = $region28
      $region27: #{multibox_loss.1} parent=19 // pred_region
        %p203 = scmp.lt.s32.totalorder %s20, 1
        %s204 = scalar_select %p203, %s20, 1
        %s205 = smul.addr %s204, 8
        %s206 = scalar_lea.vmem %s3, %s205
      $region28: #{multibox_loss.1} parent=19 // pred_fallthru
        _
      // Predicated region
      $region29: #{multibox_loss.1} parent=19 // pred_check
        %p207 = pneg %p113
      $region30: #{multibox_loss.1} parent=19 // pred_check_branch
        %209 = sbr.rel (%p207) target = $region32
      $region31: #{multibox_loss.1} parent=19 // pred_region
        %p210 = scmp.lt.s32.totalorder %s20, 1
        %s211 = scalar_select %p210, %s20, 1
        %s212 = smul.addr %s211, 8
        %s213 = scalar_lea.vmem %s4, %s212
      $region32: #{multibox_loss.1} parent=19 // pred_fallthru
        _
      // Predicated region
      $region33: #{multibox_loss.1} parent=19 // pred_check
        %p214 = pneg %p139
      $region34: #{multibox_loss.1} parent=19 // pred_check_branch
        %216 = sbr.rel (%p214) target = $region36
      $region35: #{multibox_loss.1} parent=19 // pred_region
        %p217 = scmp.lt.s32.totalorder %s20, 1
        %s218 = scalar_select %p217, %s20, 1
        %s219 = smul.addr %s218, 4
        %s220 = scalar_lea.vmem %s5, %s219
      $region36: #{multibox_loss.1} parent=19 // pred_fallthru
        _
    $region20: #{multibox_loss.1} parent=5 // pred_fallthru
      _
    %p221 = scmp.le.s32.totalorder 1, %s20
    %p222 = scmp.lt.s32.totalorder %s20, 3
    %p223 = pnand %p221, %p222
    %p224 = pneg %p223
    // Predicated region
    $region37: #{multibox_loss.1} parent=5 // pred_check
      _
    $region38: #{multibox_loss.1} parent=5 // pred_check_branch
      %226 = sbr.rel (%p223) target = $region40
    $region39: #{multibox_loss.1} parent=5 // pred_region
      %s227 = ssub.s32 %s20, 1
      %p228 = pneg %p41
      %p229 = pneg %p38
      %p230 = scmp.lt.s32.totalorder %s25, 1
      %s231 = scalar_select %p230, %s25, 1
      %s232 = smul.addr %s231, 4
      %s233 = scalar_lea.vmem %s2, %s232
      %p234 = pneg %p67
      %p235 = pneg %p64
      %p236 = scmp.lt.s32.totalorder %s25, 1
      %s237 = scalar_select %p236, %s25, 1
      %s238 = smul.addr %s237, 8
      %s239 = scalar_lea.vmem %s3, %s238
      %p240 = pneg %p93
      %p241 = pneg %p90
      %p242 = scmp.lt.s32.totalorder %s25, 1
      %s243 = scalar_select %p242, %s25, 1
      %s244 = smul.addr %s243, 8
      %s245 = scalar_lea.vmem %s4, %s244
      %p246 = pneg %p119
      %p247 = pneg %p116
      %p248 = scmp.lt.s32.totalorder %s25, 1
      %s249 = scalar_select %p248, %s25, 1
      %s250 = smul.addr %s249, 4
      %s251 = scalar_lea.vmem %s5, %s250
      %p252 = pneg %p145
      %p253 = pneg %p142
      %p254 = pneg %p171
      %p255 = pneg %p168
      %p256 = scmp.lt.s32.totalorder %s25, 1
      %s257 = scalar_select %p256, %s25, 1
      %s258 = smul.addr %s257, 8
      %s259 = scalar_lea.vmem %s6, %s258
      %p260 = scmp.lt.s32.totalorder %s25, 1
      %s261 = scalar_select %p260, %s25, 1
      %s262 = smul.addr %s261, 4
      %s263 = scalar_lea.vmem %s2, %s262
      %p264 = scmp.lt.s32.totalorder %s25, 1
      %s265 = scalar_select %p264, %s25, 1
      %s266 = smul.addr %s265, 8
      %s267 = scalar_lea.vmem %s3, %s266
      %p268 = scmp.lt.s32.totalorder %s25, 1
      %s269 = scalar_select %p268, %s25, 1
      %s270 = smul.addr %s269, 8
      %s271 = scalar_lea.vmem %s4, %s270
      %p272 = scmp.lt.s32.totalorder %s25, 1
      %s273 = scalar_select %p272, %s25, 1
      %s274 = smul.addr %s273, 4
      %s275 = scalar_lea.vmem %s5, %s274
      %p276 = scmp.lt.s32.totalorder %s25, 1
      %s277 = scalar_select %p276, %s25, 1
      %s278 = smul.addr %s277, 8
      %s279 = scalar_lea.vmem %s6, %s278
      %s280 = sld [smem:[#allocation3 + %s25]]
      %v281 = vld [vmem:[%s1] sm:$0xff]
      %v283 = vrot.slane %v281, 6
      %v285 = vsub.f32 %v281, %v283
      %v287 = vrot.slane %v285, 1
      %v289 = vmul.f32 %v285, %v287
      %v290 = vld [vmem:[%s275] sm:$0xf]
      %292 = vrot.lane.b32.xlu0 %v290, 2
      %v293 = vpop.permute.xlu0 %292
      %v295 = vsub.f32 %v290, %v293
      %297 = vrot.lane.b32.xlu0 %v295, 127
      %v298 = vpop.permute.xlu0 %297
      %v300 = vmul.f32 %v295, %v298
      %v301 = vld [vmem:[%s271] sm:$0x1f]
      %v302 = vlaneseq
      %v303 = vshrl.u32 %v302, 7
      %v304 = vstv %s280
      %vm305 = vcmp.lt.s32.totalorder %v303, %v304
      %v306 = vlaneseq
      %v307 = vand.u32 %v306, 127
      %v308 = vperm.slane %v281, 2
      %309 = vset.pattern.permute.xlu0 2
      %310 = vperm.xlu0 %309, %v290
      %v311 = vpop.permute.xlu0 %310
      %v313 = vmin.f32 %v308, %v311
      %v314 = vperm.slane %v281, 0
      %315 = vset.pattern.permute.xlu0 0
      %316 = vperm.xlu0 %315, %v290
      %v317 = vpop.permute.xlu0 %316
      %v319 = vmax.f32 %v314, %v317
      %v320 = vsub.f32 %v313, %v319
      %v321 = vmax.f32 %v320, 0.0
      %v322 = vperm.slane %v281, 3
      %323 = vset.pattern.permute.xlu0 3
      %324 = vperm.xlu0 %323, %v290
      %v325 = vpop.permute.xlu0 %324
      %v327 = vmin.f32 %v322, %v325
      %v328 = vperm.slane %v281, 1
      %329 = vset.pattern.permute.xlu0 1
      %330 = vperm.xlu0 %329, %v290
      %v331 = vpop.permute.xlu0 %330
      %v333 = vmax.f32 %v328, %v331
      %v334 = vsub.f32 %v327, %v333
      %v335 = vmax.f32 %v334, 0.0
      %v336 = vmul.f32 %v321, %v335
      %v337 = vperm.slane %v289, 2
      %339 = vset.pattern.permute.xlu0 2
      %340 = vperm.xlu0 %339, %v300
      %v341 = vpop.permute.xlu0 %340
      %v343 = vadd.f32 %v337, %v341
      %v344 = vsub.f32 %v343, %v336
      %v345 = vrcp.pop %v344
      %v346 = vmul.f32 %v344, %v345
      %v347 = vsub.f32 1.0, %v346
      %v348 = vmul.f32 %v345, %v347
      %v349 = vadd.f32 %v345, %v348
      %vm350 = vweird.f32 %v344
      %vm351 = vweird.f32 %v345
      %vm352 = vmor %vm350, %vm351
      %v353 = vsel %vm352, %v345, %v349
      %v354 = vand.u32 2147483647, %v344
      %vm355 = vcmp.eq.f32.partialorder %v354, 8.507059e+37
      %v356 = vand.u32 %v344, 2147483648
      %v357 = vor.u32 1.1754944e-38, %v356
      %v358 = vsel %vm355, %v357, %v353
      %v359 = vmul.f32 %v336, %v358
      %v360 = vsel %vm305, 1, 0
      %vm361 = vcmp.eq.s32.totalorder %v360, 1
      %v362 = vsel %vm361, %v359, -1.0
      %vm363 = vcmask 1043456
      %v364 = vsel %vm363, %v362, -inf
      %v365 = vrot.slane %v364, 4
      %v366 = vmax.f32 %v364, %v365
      %v367 = vrot.slane %v366, 2
      %v368 = vmax.f32 %v366, %v367
      %v369 = vrot.slane %v368, 1
      %v370 = vmax.f32 %v368, %v369
      %vm371 = vcmp.eq.f32.partialorder %v362, %v370
      %v372 = vsel %vm371, %v303, 4
      %v373 = vsel %vm363, %v372, 2147483647
      %v374 = vrot.slane %v373, 4
      %vm375 = vcmp.lt.s32.totalorder %v373, %v374
      %v376 = vsel %vm375, %v373, %v374
      %v377 = vrot.slane %v376, 2
      %vm378 = vcmp.lt.s32.totalorder %v376, %v377
      %v379 = vsel %vm378, %v376, %v377
      %v380 = vrot.slane %v379, 1
      %vm381 = vcmp.lt.s32.totalorder %v379, %v380
      %v382 = vsel %vm381, %v379, %v380
      %383 = vmax.xlane.f32.xlu0 %v364
      %v384 = vpop.xlane.xlu0 %383
      %vm385 = vcmp.eq.f32.partialorder %v362, %v384
      %v386 = vsel %vm385, %v307, 128
      %v387 = vsel %vm363, %v386, 2147483647
      %v388 = vand.u32 %v387, 65535
      %v389 = vshra.s32 %v387, 16
      %v390 = vcvt.s32.f32 %v388
      %v391 = vcvt.s32.f32 %v389
      %392 = vmin.xlane.f32.xlu0 %v391
      %v393 = vpop.xlane.xlu0 %392
      %vm394 = vcmp.eq.f32.partialorder %v391, %v393
      %v395 = vsel %vm394, %v390, inf
      %396 = vmin.xlane.f32.xlu0 %v395
      %v397 = vpop.xlane.xlu0 %396
      %v398 = vcvt.f32.s32 %v397
      %v399 = vcvt.f32.s32 %v393
      %v400 = vshll.u32 %v399, 16
      %v401 = vadd.s32 %v400, %v398
      %vm402 = vcmp.eq.s32.totalorder %v307, %v401
      %vm403 = vmand %vm402, %vm361
      %v404 = vsel %vm403, %v303, 4294967295
      %v405 = vsel %vm363, %v404, 2147483648
      %v406 = vrot.slane %v405, 4
      %vm407 = vcmp.gt.s32.totalorder %v405, %v406
      %v408 = vsel %vm407, %v405, %v406
      %v409 = vrot.slane %v408, 2
      %vm410 = vcmp.gt.s32.totalorder %v408, %v409
      %v411 = vsel %vm410, %v408, %v409
      %v412 = vrot.slane %v411, 1
      %vm413 = vcmp.gt.s32.totalorder %v411, %v412
      %v414 = vsel %vm413, %v411, %v412
      %vm415 = vcmp.ge.s32.totalorder %v414, 0
      %v416 = vsel %vm415, 2.0, %v370
      %v417 = vsel %vm415, %v414, %v382
      %vm418 = vcmp.eq.s32.totalorder %v303, %v417
      %v419 = vsel %vm418, 1, 0
      %v420 = vcvt.s32.f32 %v419
      %vm421 = vcmask 31744
      %v423 = vsel %vm421, %v301, 0
      %v426 = vsel %vm363, %v420, 0
      %428 = vmatpush.msra.mxu0 0.0
      %429 = vmatpush.msra.mxu0 0.0
      %430 = vmatpush.msra.mxu0 0.0
      %431 = vmatpush.msra.mxu0 0.0
      %432 = vmatpush.msra.mxu0 0.0
      %433 = vmatpush.msra.mxu0 0.0
      %434 = vmatpush.msra.mxu0 0.0
      %435 = vmatpush.msra.mxu0 0.0
      %436 = vmatpush.msra.mxu0 0.0
      %437 = vmatpush.msra.mxu0 0.0
      %438 = vmatpush.msra.mxu0 0.0
      %439 = vmatpush.msra.mxu0 0.0
      %440 = vmatpush.msra.mxu0 0.0
      %441 = vmatpush.msra.mxu0 0.0
      %442 = vmatpush.msra.mxu0 0.0
      %443 = vmatpush.msra.mxu0 %v426
      %444 = vmatmul.f32.gmra.mxu0 %v423
      %v445 = vpop.f32.mrf.mxu0
      %v446 = vadd.f32 0.0, %v445
      %447 = vdwg.mxu0
      %vm448 = vcmp.lt.f32.partialorder %v416, 0.5
      %v449 = vadd.f32 %v446, 1.0
      %v450 = vcvt.f32.s32.to.zero.pseudo %v449
      %v451 = vsel %vm448, 0, %v450
      %vm452 = vcmp.gt.s32.totalorder %v451, 0
      %v453 = vsel %vm452, 1, 0
      %vm454 = vcmask 1044484
      %v455 = vsel %vm454, %v453, 0
      %v456 = vand.u32 %v455, 65535
      %v457 = vshrl.u32 %v455, 16
      %v458 = vcvt.s32.f32 %v456
      %v459 = vcvt.s32.f32 %v457
      %460 = vadd.xlane.f32.xlu0 %v458
      %v461 = vpop.xlane.xlu0 %460
      %462 = vadd.xlane.f32.xlu0 %v459
      %v463 = vpop.xlane.xlu0 %462
      %v464 = vcvt.f32.s32 %v461
      %v465 = vcvt.f32.s32 %v463
      %v466 = vshll.u32 %v465, 16
      %v467 = vadd.s32 %v466, %v464
      %v468 = vrot.slane %v467, 4
      %v469 = vadd.s32 %v467, %v468
      %v470 = vrot.slane %v469, 2
      %v471 = vadd.s32 %v469, %v470
      %v472 = vrot.slane %v471, 1
      %v473 = vadd.s32 %v471, %v472
      %s474 = vtos %v473
      %v475 = vld [vmem:[%s263] sm:$0xf]
      %v477 = vrot.slane %v446, 2
      %v479 = vadd.f32 %v446, %v477
      %v480 = vmul.f32 %v479, 0.5
      %v481 = vrot.slane %v281, 4
      %v483 = vsub.f32 %v480, %v481
      %v484 = vmul.f32 %v483, %v283
      %v485 = vmul.f32 %v484, 10.0
      %v486 = vrot.slane %v446, 6
      %v488 = vsub.f32 %v446, %v486
      %v489 = vmul.f32 %v488, %v481
      %v490 = vlog2.pop %v489
      %v491 = vmul.f32 %v490, 0.6931472
      %v492 = vmul.f32 %v491, 5.0
      %v493 = vsub.f32 %v475, %v485
      %v494 = vand.u32 2147483647, %v493
      %vm495 = vcmp.lt.f32.partialorder %v494, 1.0
      %v496 = vmul.f32 %v493, 0.5
      %v497 = vmul.f32 %v496, %v493
      %v498 = vsub.f32 %v494, 0.5
      %v499 = vsel %vm495, %v497, %v498
      %v500 = vsub.f32 %v475, %v492
      %v501 = vand.u32 2147483647, %v500
      %vm502 = vcmp.lt.f32.partialorder %v501, 1.0
      %v503 = vmul.f32 %v500, 0.5
      %v504 = vmul.f32 %v503, %v500
      %v505 = vsub.f32 %v501, 0.5
      %v506 = vsel %vm502, %v504, %v505
      %v508 = vrot.slane %v506, 2
      %v510 = vadd.f32 %v499, %v508
      %vm511 = vcmask 1041408
      %v512 = vsel %vm511, %v510, 0.0
      %v513 = vrot.slane %v512, 4
      %v514 = vadd.f32 %v512, %v513
      %v515 = vrot.slane %v514, 2
      %v516 = vadd.f32 %v514, %v515
      %v517 = vrot.slane %v516, 1
      %v518 = vadd.f32 %v516, %v517
      %v519 = vsel %vm452, %v518, 0.0
      %v521 = vrot.slane %v519, 4
      %vm523 = vcmask 1040384
      %v524 = vsel %vm523, %v521, 0.0
      %525 = vadd.xlane.f32.xlu0 %v524
      %v526 = vpop.xlane.xlu0 %525
      %v527 = vrot.slane %v526, 4
      %v528 = vadd.f32 %v526, %v527
      %v529 = vrot.slane %v528, 2
      %v530 = vadd.f32 %v528, %v529
      %v531 = vrot.slane %v530, 1
      %v532 = vadd.f32 %v530, %v531
      %s533 = vtos %v532
      %v534 = vld [vmem:[%s267] sm:$0xff]
      %v535 = vrot.slane %v534, 4
      %v536 = vmax.f32 %v534, %v535
      %v537 = vrot.slane %v536, 2
      %v538 = vmax.f32 %v536, %v537
      %v539 = vrot.slane %v538, 1
      %v540 = vmax.f32 %v538, %v539
      %v541 = vsub.f32 %v534, %v540
      %v542 = vmul.f32 %v541, 1.442695
      %v543 = vpow.pop %v542
      %v544 = vrot.slane %v543, 4
      %v545 = vadd.f32 %v543, %v544
      %v546 = vrot.slane %v545, 2
      %v547 = vadd.f32 %v545, %v546
      %v548 = vrot.slane %v547, 1
      %v549 = vadd.f32 %v547, %v548
      %v550 = vlog2.pop %v549
      %v551 = vmul.f32 %v550, 0.6931472
      %v552 = vadd.f32 %v551, %v540
      %v553 = vperm.slane %v451, 4
      %vm554 = vcmp.eq.s32.totalorder %v303, %v553
      %v555 = vsel %vm554, %v534, 0.0
      %v556 = vrot.slane %v555, 4
      %v557 = vadd.f32 %v555, %v556
      %v558 = vrot.slane %v557, 2
      %v559 = vadd.f32 %v557, %v558
      %v560 = vrot.slane %v559, 1
      %v561 = vadd.f32 %v559, %v560
      %v562 = vsub.f32 %v552, %v561
      %v563 = vsel %vm452, 0.0, %v562
      %s564 = smul.u32 %s474, 3
      %p565 = scmp.lt.s32.totalorder %s564, 127
      %s566 = scalar_select %p565, %s564, 127
      %v567 = vmax.f32 %v563, 0.0
      loop: start=0, step=1, limit=31
      $region41: #{multibox_loss.1} parent=39 // loop_pre_header
        _
      $region42: #{multibox_loss.1} parent=39 // loop_header
        %s570 = sphi 0, %s574
        %p571 = scmp.ge.s32.totalorder %s570, 31
        %s575 = sphi 0, %s602
        %s576 = sphi 1073741824, %s603
      $region43: #{multibox_loss.1} parent=39 // loop_header_branch
        %573 = sbr.rel (%p571) target = $region47
      $region44: #{multibox_loss.1} parent=39 // loop_body
        %s577 = sor.u32 %s575, %s576
        %v578 = vstv %s577
        %vm579 = vcmp.ge.s32.totalorder %v567, %v578
        %v580 = vsel %vm579, 1, 0
        %v581 = vsel %vm454, %v580, 0
        %v582 = vand.u32 %v581, 65535
        %v583 = vshrl.u32 %v581, 16
        %v584 = vcvt.s32.f32 %v582
        %v585 = vcvt.s32.f32 %v583
        %586 = vadd.xlane.f32.xlu0 %v584
        %v587 = vpop.xlane.xlu0 %586
        %588 = vadd.xlane.f32.xlu0 %v585
        %v589 = vpop.xlane.xlu0 %588
        %v590 = vcvt.f32.s32 %v587
        %v591 = vcvt.f32.s32 %v589
        %v592 = vshll.u32 %v591, 16
        %v593 = vadd.s32 %v592, %v590
        %v594 = vrot.slane %v593, 4
        %v595 = vadd.s32 %v593, %v594
        %v596 = vrot.slane %v595, 2
        %v597 = vadd.s32 %v595, %v596
        %v598 = vrot.slane %v597, 1
        %v599 = vadd.s32 %v597, %v598
        %s600 = vtos %v599
        %p601 = scmp.ge.s32.totalorder %s600, %s566
        %s602 = scalar_select %p601, %s577, %s575
        %s603 = sshra.s32 %s576, 1
      $region45: #{multibox_loss.1} parent=39 // loop_footer
        %s574 = sadd.s32 1, %s570
      $region46: #{multibox_loss.1} parent=39 // loop_footer_branch
        %569 = sbr.rel target = $region42
      $region47: #{multibox_loss.1} parent=39 // loop_exit
        _
      %v604 = vstv %s575
      %vm605 = vcmp.gt.s32.totalorder %v567, %v604
      %vm606 = vcmp.eq.s32.totalorder %v567, %v604
      %v607 = vsel %vm605, 1, 0
      %v608 = vsel %vm454, %v607, 0
      %v609 = vand.u32 %v608, 65535
      %v610 = vshrl.u32 %v608, 16
      %v611 = vcvt.s32.f32 %v609
      %v612 = vcvt.s32.f32 %v610
      %613 = vadd.xlane.f32.xlu0 %v611
      %v614 = vpop.xlane.xlu0 %613
      %615 = vadd.xlane.f32.xlu0 %v612
      %v616 = vpop.xlane.xlu0 %615
      %v617 = vcvt.f32.s32 %v614
      %v618 = vcvt.f32.s32 %v616
      %v619 = vshll.u32 %v618, 16
      %v620 = vadd.s32 %v619, %v617
      %v621 = vrot.slane %v620, 4
      %v622 = vadd.s32 %v620, %v621
      %v623 = vrot.slane %v622, 2
      %v624 = vadd.s32 %v622, %v623
      %v625 = vrot.slane %v624, 1
      %v626 = vadd.s32 %v624, %v625
      %s627 = vtos %v626
      %s628 = ssub.s32 %s566, %s627
      loop: start=0, step=1, limit=10
      $region48: #{multibox_loss.1} parent=39 // loop_pre_header
        _
      $region49: #{multibox_loss.1} parent=39 // loop_header
        %s630 = sphi 0, %s634
        %p631 = scmp.ge.s32.totalorder %s630, 10
        %s635 = sphi 0, %s665
        %s636 = sphi 128, %s666
      $region50: #{multibox_loss.1} parent=39 // loop_header_branch
        %633 = sbr.rel (%p631) target = $region54
      $region51: #{multibox_loss.1} parent=39 // loop_body
        %s637 = sadd.s32 %s635, %s636
        %s638 = sshra.s32 %s637, 1
        %v639 = vstv %s638
        %vm640 = vcmp.lt.s32.totalorder %v307, %v639
        %vm641 = vmand %vm606, %vm640
        %v642 = vsel %vm641, 1, 0
        %v643 = vsel %vm454, %v642, 0
        %v644 = vand.u32 %v643, 65535
        %v645 = vshrl.u32 %v643, 16
        %v646 = vcvt.s32.f32 %v644
        %v647 = vcvt.s32.f32 %v645
        %648 = vadd.xlane.f32.xlu0 %v646
        %v649 = vpop.xlane.xlu0 %648
        %650 = vadd.xlane.f32.xlu0 %v647
        %v651 = vpop.xlane.xlu0 %650
        %v652 = vcvt.f32.s32 %v649
        %v653 = vcvt.f32.s32 %v651
        %v654 = vshll.u32 %v653, 16
        %v655 = vadd.s32 %v654, %v652
        %v656 = vrot.slane %v655, 4
        %v657 = vadd.s32 %v655, %v656
        %v658 = vrot.slane %v657, 2
        %v659 = vadd.s32 %v657, %v658
        %v660 = vrot.slane %v659, 1
        %v661 = vadd.s32 %v659, %v660
        %s662 = vtos %v661
        %p663 = scmp.ge.s32.totalorder %s662, %s628
        %s664 = sadd.s32 %s638, 1
        %s665 = scalar_select %p663, %s635, %s664
        %s666 = scalar_select %p663, %s638, %s636
      $region52: #{multibox_loss.1} parent=39 // loop_footer
        %s634 = sadd.s32 1, %s630
      $region53: #{multibox_loss.1} parent=39 // loop_footer_branch
        %629 = sbr.rel target = $region49
      $region54: #{multibox_loss.1} parent=39 // loop_exit
        _
      %v667 = vstv %s635
      %vm668 = vcmp.lt.s32.totalorder %v307, %v667
      %vm669 = vmand %vm606, %vm668
      %vm670 = vmor %vm605, %vm669
      %vm671 = vmor %vm452, %vm670
      %v672 = vsel %vm671, %v562, 0.0
      %v674 = vrot.slane %v672, 4
      %v676 = vsel %vm523, %v674, 0.0
      %677 = vadd.xlane.f32.xlu0 %v676
      %v678 = vpop.xlane.xlu0 %677
      %v679 = vrot.slane %v678, 4
      %v680 = vadd.f32 %v678, %v679
      %v681 = vrot.slane %v680, 2
      %v682 = vadd.f32 %v680, %v681
      %v683 = vrot.slane %v682, 1
      %v684 = vadd.f32 %v682, %v683
      %s685 = vtos %v684
      %vm686 = vcmp.eq.s32.totalorder %v307, 0
      %v687 = vstv %s533
      %v688 = vsel %vm686, %v687, 0.0
      %vm689 = vcmp.eq.s32.totalorder %v307, 1
      %v690 = vstv %s685
      %v691 = vsel %vm689, %v690, 0.0
      %v692 = vadd.f32 %v688, %v691
      %vm693 = vcmp.eq.s32.totalorder %v307, 2
      %s694 = scvt.s32.f32 %s474
      %v695 = vstv %s694
      %v696 = vsel %vm693, %v695, 0.0
      %v697 = vadd.f32 %v692, %v696
      %698 = vst [vmem:[%s279] sm:$0xff] %v697
      %p699 = scmp.lt.s32.totalorder %s25, 1
      %s700 = scalar_select %p699, %s25, 1
      %s701 = smul.addr %s700, 8
      %s702 = scalar_lea.vmem %s6, %s701
      // Predicated region
      $region55: #{multibox_loss.1} parent=39 // pred_check
        %p703 = pneg %p168
      $region56: #{multibox_loss.1} parent=39 // pred_check_branch
        %705 = sbr.rel (%p703) target = $region58
      $region57: #{multibox_loss.1} parent=39 // pred_region
        _
      $region58: #{multibox_loss.1} parent=39 // pred_fallthru
        _
    $region40: #{multibox_loss.1} parent=5 // pred_fallthru
      _
    %p706 = scmp.le.s32.totalorder 2, %s20
    // Predicated region
    $region59: #{multibox_loss.1} parent=5 // pred_check
      %p707 = pneg %p706
    $region60: #{multibox_loss.1} parent=5 // pred_check_branch
      %709 = sbr.rel (%p707) target = $region62
    $region61: #{multibox_loss.1} parent=5 // pred_region
      %s710 = ssub.s32 %s20, 2
      // Predicated region
      $region63: #{multibox_loss.1} parent=61 // pred_check
        %p711 = pneg %p174
      $region64: #{multibox_loss.1} parent=61 // pred_check_branch
        %713 = sbr.rel (%p711) target = $region66
      $region65: #{multibox_loss.1} parent=61 // pred_region
        %p714 = scmp.lt.s32.totalorder %s26, 1
        %s715 = scalar_select %p714, %s26, 1
        %s716 = smul.addr %s715, 8
        %s717 = scalar_lea.vmem %s6, %s716
      $region66: #{multibox_loss.1} parent=61 // pred_fallthru
        _
    $region62: #{multibox_loss.1} parent=5 // pred_fallthru
      _
  $region6: #{multibox_loss.1} parent=0 // loop_footer
    %s24 = sadd.s32 1, %s20
  $region7: #{multibox_loss.1} parent=0 // loop_footer_branch
    %19 = sbr.rel target = $region3
  $region8: #{multibox_loss.1} parent=0 // loop_exit
    _

</llo_original>
